<compile_context>
chip_gen: v6e
topology: v6e:2x2x1
jax: 0.10.0
libtpu: 0.0.40
codegen_flags: <defaults>
</compile_context>

<pallas_src>
from functools import partial

import jax
import jax.numpy as jnp
from jax.experimental import pallas as pl
from jax.experimental.pallas import tpu as pltpu


def _round_up(n, m):
    return ((n + m - 1) // m) * m


def _cdiv(a, b):
    return -(-a // b)


def _choose_tile(batch, block_b):
    """Pick (tb, padded_batch): tb a multiple of 128, roughly <= block_b."""
    block_b = max(128, _round_up(block_b, 128))        # force 128-multiple tiles
    padded128 = _round_up(batch, 128)
    if padded128 <= block_b:
        return padded128, padded128                    # single block
    n_min = _cdiv(padded128, block_b)
    # If batch is 128-aligned, try a tile in [block_b/2, block_b] that divides
    # it exactly -> no padding copy of x at all (zero extra HBM pass).
    if batch % 128 == 0:
        units = batch // 128
        for n in range(n_min, 2 * n_min + 1):
            if n <= units and units % n == 0:
                return (units // n) * 128, batch
    tb = _round_up(_cdiv(padded128, n_min), 128)
    return tb, n_min * tb


def _mlp_kernel(x_ref, w1_ref, b1_ref, w2_ref, b2_ref, o_ref):
    # seq1: Linear(10, 20) + ReLU. Batch on sublanes, features on lanes.
    #   h = x (tb,10) @ W1 (10,20) -> (tb, 20)
    h = jnp.dot(x_ref[...], w1_ref[...], preferred_element_type=jnp.float32)
    h = jnp.maximum(h + b1_ref[...], 0.0)              # b1 (1,20) broadcast
    # seq2: Linear(20, 1).
    #   y = h (tb,20) @ W2 (20,1) -> (tb, 1)
    y = jnp.dot(h, w2_ref[...], preferred_element_type=jnp.float32)
    o_ref[...] = (y + b2_ref[0, 0]).astype(o_ref.dtype)


@partial(jax.jit, static_argnames=("block_b",))
def model_parallel_net(x, w1, b1, w2, b2, *, block_b=16384):
    """Forward pass of ModelParallelNet: relu(x @ W1 + b1) @ W2 + b2.

    x : (B, 10) float32
    w1: (10, 20), b1: (1, 20) or (20,)
    w2: (20, 1),  b2: (1, 1) or (1,) or ()
    returns (B, 1)
    """
    batch, in_features = x.shape
    hidden = w1.shape[1]

    tb, padded = _choose_tile(batch, block_b)

    # Only pad when a non-dividing tile is unavoidable; no transpose ever.
    x_p = x if padded == batch else jnp.pad(x, ((0, padded - batch), (0, 0)))
    b1_r = jnp.reshape(b1, (1, hidden))                 # (1, 20)
    b2_s = jnp.reshape(b2, (1, 1))                      # (1, 1) scalar -> SMEM

    grid = (padded // tb,)

    out = pl.pallas_call(
        _mlp_kernel,
        out_shape=jax.ShapeDtypeStruct((padded, 1), x.dtype),
        grid=grid,
        in_specs=[
            # batch-tiled activation block (row-major, streamed)
            pl.BlockSpec((tb, in_features), lambda i: (i, 0)),
            # weights/biases: constant block index -> VMEM-resident
            pl.BlockSpec((in_features, hidden), lambda i: (0, 0)),
            pl.BlockSpec((1, hidden), lambda i: (0, 0)),
            pl.BlockSpec((hidden, 1), lambda i: (0, 0)),
            # scalar bias in SMEM
            pl.BlockSpec((1, 1), lambda i: (0, 0),
                         memory_space=pltpu.MemorySpace.SMEM),
        ],
        out_specs=pl.BlockSpec((tb, 1), lambda i: (i, 0)),
        compiler_params=pltpu.CompilerParams(
            dimension_semantics=("parallel",),
            vmem_limit_bytes=64 << 20,
        ),
    )(x_p, w1, b1_r, w2, b2_s)

    # Padded rows (if any) compute relu(b1)@W2+b2 garbage; slice them off.
    return out[:batch]


def init_params(key):
    """Deterministic init mimicking nn.Linear defaults (U[-1/sqrt(fan_in), +])."""
    k1, k2, k3, k4 = jax.random.split(key, 4)
    bound1 = 1.0 / jnp.sqrt(10.0)
    bound2 = 1.0 / jnp.sqrt(20.0)
    w1 = jax.random.uniform(k1, (10, 20), jnp.float32, -bound1, bound1)
    b1 = jax.random.uniform(k2, (1, 20), jnp.float32, -bound1, bound1)
    w2 = jax.random.uniform(k3, (20, 1), jnp.float32, -bound2, bound2)
    b2 = jax.random.uniform(k4, (1, 1), jnp.float32, -bound2, bound2)
    return w1, b1, w2, b2


if __name__ == "__main__":
    key = jax.random.PRNGKey(0)
    k_params, k_x1, k_x2, k_x3 = jax.random.split(key, 4)
    w1, b1, w2, b2 = init_params(k_params)

    def ref_fn(x):
        return jnp.maximum(x @ w1 + b1, 0.0) @ w2 + b2

    # Small batch (matches the toy spec).
    batch = 8
    x = jax.random.normal(k_x1, (batch, 10), jnp.float32)
    out = jax.block_until_ready(model_parallel_net(x, w1, b1, w2, b2))
    assert out.shape == (batch, 1)
    assert jnp.allclose(out, ref_fn(x), atol=1e-5, rtol=1e-5)

    # Non-multiple-of-128 batch to exercise the padding path.
    batch2 = 200
    x2 = jax.random.normal(k_x2, (batch2, 10), jnp.float32)
    out2 = jax.block_until_ready(model_parallel_net(x2, w1, b1, w2, b2))
    assert out2.shape == (batch2, 1)
    assert jnp.allclose(out2, ref_fn(x2), atol=1e-5, rtol=1e-5)

    # 128-aligned batch to exercise the zero-padding (no extra copy) path.
    batch3 = 512
    x3 = jax.random.normal(k_x3, (batch3, 10), jnp.float32)
    out3 = jax.block_until_ready(model_parallel_net(x3, w1, b1, w2, b2))
    assert out3.shape == (batch3, 1)
    assert jnp.allclose(out3, ref_fn(x3), atol=1e-5, rtol=1e-5)

    print("KERNEL_OK")
</pallas_src>

<mosaic_0001>
module attributes {stable_mosaic.version = 11 : i64} {
  func.func @_mlp_kernel(%arg0: i32, %arg1: memref<128x10xf32, #tpu.memory_space<vmem>>, %arg2: memref<10x20xf32, #tpu.memory_space<vmem>>, %arg3: memref<1x20xf32, #tpu.memory_space<vmem>>, %arg4: memref<20x1xf32, #tpu.memory_space<vmem>>, %arg5: memref<1x1xf32, #tpu.memory_space<smem>>, %arg6: memref<128x1xf32, #tpu.memory_space<vmem>>) attributes {dimension_semantics = [#tpu.dimension_semantics<parallel>], iteration_bounds = array<i64: 1>, scalar_prefetch = 0 : i64, scratch_operands = 0 : i64, tpu.core_type = #tpu.core_type<tc>, window_params = [{transform_indices = @transform_0, window_bounds = array<i64: 128, 10>}, {pipeline_mode = #tpu.pipeline_mode<synchronous>, transform_indices = @transform_1, window_bounds = array<i64: 10, 20>}, {pipeline_mode = #tpu.pipeline_mode<synchronous>, transform_indices = @transform_2, window_bounds = array<i64: 1, 20>}, {pipeline_mode = #tpu.pipeline_mode<synchronous>, transform_indices = @transform_3, window_bounds = array<i64: 20, 1>}, {transform_indices = @transform_4, window_bounds = array<i64: 1, 1>}, {transform_indices = @transform_5, window_bounds = array<i64: 128, 1>}]} {
    %c0 = arith.constant 0 : index
    %c0_0 = arith.constant 0 : index
    %0 = vector.load %arg1[%c0, %c0_0] : memref<128x10xf32, #tpu.memory_space<vmem>>, vector<128x10xf32>
    %c0_1 = arith.constant 0 : index
    %c0_2 = arith.constant 0 : index
    %1 = vector.load %arg2[%c0_1, %c0_2] : memref<10x20xf32, #tpu.memory_space<vmem>>, vector<10x20xf32>
    %cst = arith.constant dense<0.000000e+00> : vector<128x20xf32>
    %2 = tpu.matmul %0, %1, %cst {dimension_numbers = #tpu.dot_dimension_numbers<[1], [0], [0], [1], [0, 0, 1, 1], [], []>} : vector<128x10xf32>, vector<10x20xf32>, vector<128x20xf32> -> vector<128x20xf32>
    %c0_3 = arith.constant 0 : index
    %c0_4 = arith.constant 0 : index
    %3 = vector.load %arg3[%c0_3, %c0_4] : memref<1x20xf32, #tpu.memory_space<vmem>>, vector<1x20xf32>
    %4 = vector.broadcast %3 : vector<1x20xf32> to vector<128x20xf32>
    %5 = arith.addf %2, %4 : vector<128x20xf32>
    %cst_5 = arith.constant 0.000000e+00 : f32
    %6 = vector.broadcast %cst_5 : f32 to vector<128x20xf32>
    %7 = arith.maximumf %5, %6 : vector<128x20xf32>
    %c0_6 = arith.constant 0 : index
    %c0_7 = arith.constant 0 : index
    %8 = vector.load %arg4[%c0_6, %c0_7] : memref<20x1xf32, #tpu.memory_space<vmem>>, vector<20x1xf32>
    %cst_8 = arith.constant dense<0.000000e+00> : vector<128x1xf32>
    %9 = tpu.matmul %7, %8, %cst_8 {dimension_numbers = #tpu.dot_dimension_numbers<[1], [0], [0], [1], [0, 0, 1, 1], [], []>} : vector<128x20xf32>, vector<20x1xf32>, vector<128x1xf32> -> vector<128x1xf32>
    %c0_9 = arith.constant 0 : index
    %c0_10 = arith.constant 0 : index
    %10 = memref.load %arg5[%c0_9, %c0_10] : memref<1x1xf32, #tpu.memory_space<smem>>
    %11 = vector.broadcast %10 : f32 to vector<128x1xf32>
    %12 = arith.addf %9, %11 : vector<128x1xf32>
    %c0_11 = arith.constant 0 : index
    %c0_12 = arith.constant 0 : index
    %13 = vector.load %arg6[%c0_11, %c0_12] : memref<128x1xf32, #tpu.memory_space<vmem>>, vector<128x1xf32>
    tpu.vector_store %arg6[%c0_11, %c0_12], %12 {strides = array<i32>} : memref<128x1xf32, #tpu.memory_space<vmem>>, vector<128x1xf32>,
    return
  }
  func.func @transform_0(%arg0: i32) -> (i32, i32) {
    %c0_i32 = arith.constant 0 : i32
    %c0_i32_0 = arith.constant 0 : i32
    return %arg0, %c0_i32 : i32, i32
  }
  func.func @transform_1(%arg0: i32) -> (i32, i32) {
    %c0_i32 = arith.constant 0 : i32
    %c0_i32_0 = arith.constant 0 : i32
    %c0_i32_1 = arith.constant 0 : i32
    return %c0_i32, %c0_i32_0 : i32, i32
  }
  func.func @transform_2(%arg0: i32) -> (i32, i32) {
    %c0_i32 = arith.constant 0 : i32
    %c0_i32_0 = arith.constant 0 : i32
    %c0_i32_1 = arith.constant 0 : i32
    return %c0_i32, %c0_i32_0 : i32, i32
  }
  func.func @transform_3(%arg0: i32) -> (i32, i32) {
    %c0_i32 = arith.constant 0 : i32
    %c0_i32_0 = arith.constant 0 : i32
    %c0_i32_1 = arith.constant 0 : i32
    return %c0_i32, %c0_i32_0 : i32, i32
  }
  func.func @transform_4(%arg0: i32) -> (i32, i32) {
    %c0_i32 = arith.constant 0 : i32
    %c0_i32_0 = arith.constant 0 : i32
    %c0_i32_1 = arith.constant 0 : i32
    return %c0_i32, %c0_i32_0 : i32, i32
  }
  func.func @transform_5(%arg0: i32) -> (i32, i32) {
    %c0_i32 = arith.constant 0 : i32
    %c0_i32_0 = arith.constant 0 : i32
    return %arg0, %c0_i32 : i32, i32
  }
}

</mosaic_0001>

<llo_original>
// kernel: model_parallel_net.1
$region0: #{model_parallel_net.1}
  #allocation0 [shape = 'u32[]', space=smem, size = 0x4, offset = 0x4, fixed_abs, tag = 'smem constant byte address 0x4 - core index']
  #allocation1 [shape = 'u32[144,128]{1,0:T(1,128)}', space=vmem, size = 0x12000, scoped, tag = 'internal scratch']
  #allocation2 [shape = 'f32[1,1]{1,0:T(1,128)S(6)}', space=smem, size = 0x200, scoped, tag = 'scoped memory for model_parallel_net.1']
  %s0 = inlined_call_operand.vmem [shape: f32[128,10], index: 0, kind: input, shape index: {}]
  %s1 = inlined_call_operand.vmem [shape: f32[10,20], index: 1, kind: input, shape index: {}]
  %s2 = inlined_call_operand.vmem [shape: f32[1,20], index: 2, kind: input, shape index: {}]
  %s3 = inlined_call_operand.vmem [shape: f32[20,1], index: 3, kind: input, shape index: {}]
  %s4 = inlined_call_operand.<no memory space> [shape: f32[1,1], index: 4, kind: input, shape index: {}]
  %s5 = inlined_call_operand.vmem [shape: f32[128,1], index: 5, kind: output, shape index: {}]
  %s6 = sld [smem:[#allocation0]]
  $region30: #{model_parallel_net.1} parent=0
    _
  %s8 = ssub.s32 1, %s6
  %s9 = scalar_select 0, %s8, %s6
  %10 = sst [smem:[#allocation2]] %s4
  // Predicated region
  $region2: #{model_parallel_net.1} parent=0 // pred_check
    _
  $region3: #{model_parallel_net.1} parent=0 // pred_check_branch
    %12 = sbr.rel (0) target = $region5
  $region4: #{model_parallel_net.1} parent=0 // pred_region
    _
  $region5: #{model_parallel_net.1} parent=0 // pred_fallthru
    _
  // Predicated region
  $region6: #{model_parallel_net.1} parent=0 // pred_check
    _
  $region7: #{model_parallel_net.1} parent=0 // pred_check_branch
    %14 = sbr.rel (0) target = $region9
  $region8: #{model_parallel_net.1} parent=0 // pred_region
    _
  $region9: #{model_parallel_net.1} parent=0 // pred_fallthru
    _
  // Predicated region
  $region10: #{model_parallel_net.1} parent=0 // pred_check
    _
  $region11: #{model_parallel_net.1} parent=0 // pred_check_branch
    %16 = sbr.rel (0) target = $region13
  $region12: #{model_parallel_net.1} parent=0 // pred_region
    _
  $region13: #{model_parallel_net.1} parent=0 // pred_fallthru
    _
  // Predicated region
  $region14: #{model_parallel_net.1} parent=0 // pred_check
    _
  $region15: #{model_parallel_net.1} parent=0 // pred_check_branch
    %18 = sbr.rel (0) target = $region17
  $region16: #{model_parallel_net.1} parent=0 // pred_region
    _
  $region17: #{model_parallel_net.1} parent=0 // pred_fallthru
    _
  // Predicated region
  $region18: #{model_parallel_net.1} parent=0 // pred_check
    _
  $region19: #{model_parallel_net.1} parent=0 // pred_check_branch
    %20 = sbr.rel (0) target = $region21
  $region20: #{model_parallel_net.1} parent=0 // pred_region
    _
  $region21: #{model_parallel_net.1} parent=0 // pred_fallthru
    _
  %v21 = vld [vmem:[%s0] sm:$0xff]
  %v22 = vld [vmem:[%s0 + $0x8] sm:$0xff]
  %v23 = vld [vmem:[%s0 + $0x10] sm:$0xff]
  %v24 = vld [vmem:[%s0 + $0x18] sm:$0xff]
  %v25 = vld [vmem:[%s0 + $0x20] sm:$0xff]
  %v26 = vld [vmem:[%s0 + $0x28] sm:$0xff]
  %v27 = vld [vmem:[%s0 + $0x30] sm:$0xff]
  %v28 = vld [vmem:[%s0 + $0x38] sm:$0xff]
  %v29 = vld [vmem:[%s0 + $0x40] sm:$0xff]
  %v30 = vld [vmem:[%s0 + $0x48] sm:$0xff]
  %v31 = vld [vmem:[%s0 + $0x50] sm:$0xff]
  %v32 = vld [vmem:[%s0 + $0x58] sm:$0xff]
  %v33 = vld [vmem:[%s0 + $0x60] sm:$0xff]
  %v34 = vld [vmem:[%s0 + $0x68] sm:$0xff]
  %v35 = vld [vmem:[%s0 + $0x70] sm:$0xff]
  %v36 = vld [vmem:[%s0 + $0x78] sm:$0xff]
  %v37 = vld [vmem:[%s1] sm:$0xff]
  %v38 = vld [vmem:[%s1 + $0x8] sm:$0x3]
  %v39 = vld [vmem:[%s2] sm:$0x1]
  %v41 = vlaneseq
  %v42 = vshrl.u32 %v41, 7
  %v43 = vsub.s32 0, %v42
  %v44 = vrot.slane %v39, %v43
  %vm46 = vcmask 80896
  %v48 = vsel %vm46, %v21, 0
  %v51 = vsel %vm46, %v22, 0
  %v54 = vsel %vm46, %v23, 0
  %v57 = vsel %vm46, %v24, 0
  %v60 = vsel %vm46, %v25, 0
  %v63 = vsel %vm46, %v26, 0
  %v66 = vsel %vm46, %v27, 0
  %v69 = vsel %vm46, %v28, 0
  %v72 = vsel %vm46, %v29, 0
  %v75 = vsel %vm46, %v30, 0
  %v78 = vsel %vm46, %v31, 0
  %v81 = vsel %vm46, %v32, 0
  %v84 = vsel %vm46, %v33, 0
  %v87 = vsel %vm46, %v34, 0
  %v90 = vsel %vm46, %v35, 0
  %v93 = vsel %vm46, %v36, 0
  %vm95 = vcmask 1041408
  %v97 = vsel %vm95, %v38, 0
  %99 = vmatprep.subr.mxu0 0.0
  %100 = vmatpush1.msra.mxu0 0.0
  %101 = vmatprep.subr.mxu0 0.0
  %102 = vmatpush1.msra.mxu0 0.0
  %103 = vmatprep.subr.mxu0 0.0
  %104 = vmatpush1.msra.mxu0 0.0
  %105 = vmatprep.subr.mxu0 0.0
  %106 = vmatpush1.msra.mxu0 0.0
  %107 = vmatprep.subr.mxu0 0.0
  %108 = vmatpush1.msra.mxu0 0.0
  %109 = vmatprep.subr.mxu0 0.0
  %110 = vmatpush1.msra.mxu0 0.0
  %111 = vmatprep.subr.mxu0 0.0
  %112 = vmatpush1.msra.mxu0 0.0
  %113 = vmatprep.subr.mxu0 0.0
  %114 = vmatpush1.msra.mxu0 0.0
  %115 = vmatprep.subr.mxu0 0.0
  %116 = vmatpush1.msra.mxu0 0.0
  %117 = vmatprep.subr.mxu0 0.0
  %118 = vmatpush1.msra.mxu0 0.0
  %119 = vmatprep.subr.mxu0 0.0
  %120 = vmatpush1.msra.mxu0 0.0
  %121 = vmatprep.subr.mxu0 0.0
  %122 = vmatpush1.msra.mxu0 0.0
  %123 = vmatprep.subr.mxu0 0.0
  %124 = vmatpush1.msra.mxu0 0.0
  %125 = vmatprep.subr.mxu0 0.0
  %126 = vmatpush1.msra.mxu0 0.0
  %127 = vmatprep.subr.mxu0 0.0
  %128 = vmatpush1.msra.mxu0 %v97
  %129 = vmatprep.subr.mxu0 0.0
  %130 = vmatpush1.msra.mxu0 %v37
  %131 = vmatprep.subr.mxu0 0.0
  %132 = vmatpush2.msra.mxu0 0.0
  %133 = vmatprep.subr.mxu0 0.0
  %134 = vmatpush2.msra.mxu0 0.0
  %135 = vmatprep.subr.mxu0 0.0
  %136 = vmatpush2.msra.mxu0 0.0
  %137 = vmatprep.subr.mxu0 0.0
  %138 = vmatpush2.msra.mxu0 0.0
  %139 = vmatprep.subr.mxu0 0.0
  %140 = vmatpush2.msra.mxu0 0.0
  %141 = vmatprep.subr.mxu0 0.0
  %142 = vmatpush2.msra.mxu0 0.0
  %143 = vmatprep.subr.mxu0 0.0
  %144 = vmatpush2.msra.mxu0 0.0
  %145 = vmatprep.subr.mxu0 0.0
  %146 = vmatpush2.msra.mxu0 0.0
  %147 = vmatprep.subr.mxu0 0.0
  %148 = vmatpush2.msra.mxu0 0.0
  %149 = vmatprep.subr.mxu0 0.0
  %150 = vmatpush2.msra.mxu0 0.0
  %151 = vmatprep.subr.mxu0 0.0
  %152 = vmatpush2.msra.mxu0 0.0
  %153 = vmatprep.subr.mxu0 0.0
  %154 = vmatpush2.msra.mxu0 0.0
  %155 = vmatprep.subr.mxu0 0.0
  %156 = vmatpush2.msra.mxu0 0.0
  %157 = vmatprep.subr.mxu0 0.0
  %158 = vmatpush2.msra.mxu0 0.0
  %159 = vmatprep.subr.mxu0 0.0
  %160 = vmatpush2.msra.mxu0 0.0
  %161 = vmatprep.subr.mxu0 0.0
  %162 = vmatpush2.msra.mxu0 0.0
  %163 = vmatprep.mubr.f32.mxu0 0.0
  %164 = vmatmul.mubr.f32.gmra.mxu0 %v48
  %v165 = vpop.f32.mrf.mxu0
  %v166 = vadd.f32 %v44, %v165
  %v167 = vpop.f32.mrf.mxu0
  %168 = vmatprep.mubr.f32.mxu0 0.0
  %169 = vmatmul.mubr.f32.gmra.mxu0 %v51
  %v170 = vpop.f32.mrf.mxu0
  %v171 = vadd.f32 %v44, %v170
  %v172 = vpop.f32.mrf.mxu0
  %173 = vmatprep.mubr.f32.mxu0 0.0
  %174 = vmatmul.mubr.f32.gmra.mxu0 %v54
  %v175 = vpop.f32.mrf.mxu0
  %v176 = vadd.f32 %v44, %v175
  %v177 = vpop.f32.mrf.mxu0
  %178 = vmatprep.mubr.f32.mxu0 0.0
  %179 = vmatmul.mubr.f32.gmra.mxu0 %v57
  %v180 = vpop.f32.mrf.mxu0
  %v181 = vadd.f32 %v44, %v180
  %v182 = vpop.f32.mrf.mxu0
  %183 = vmatprep.mubr.f32.mxu0 0.0
  %184 = vmatmul.mubr.f32.gmra.mxu0 %v60
  %v185 = vpop.f32.mrf.mxu0
  %v186 = vadd.f32 %v44, %v185
  %v187 = vpop.f32.mrf.mxu0
  %188 = vmatprep.mubr.f32.mxu0 0.0
  %189 = vmatmul.mubr.f32.gmra.mxu0 %v63
  %v190 = vpop.f32.mrf.mxu0
  %v191 = vadd.f32 %v44, %v190
  %v192 = vpop.f32.mrf.mxu0
  %193 = vmatprep.mubr.f32.mxu0 0.0
  %194 = vmatmul.mubr.f32.gmra.mxu0 %v66
  %v195 = vpop.f32.mrf.mxu0
  %v196 = vadd.f32 %v44, %v195
  %v197 = vpop.f32.mrf.mxu0
  %198 = vmatprep.mubr.f32.mxu0 0.0
  %199 = vmatmul.mubr.f32.gmra.mxu0 %v69
  %v200 = vpop.f32.mrf.mxu0
  %v201 = vadd.f32 %v44, %v200
  %v202 = vpop.f32.mrf.mxu0
  %203 = vmatprep.mubr.f32.mxu0 0.0
  %204 = vmatmul.mubr.f32.gmra.mxu0 %v72
  %v205 = vpop.f32.mrf.mxu0
  %v206 = vadd.f32 %v44, %v205
  %v207 = vpop.f32.mrf.mxu0
  %208 = vmatprep.mubr.f32.mxu0 0.0
  %209 = vmatmul.mubr.f32.gmra.mxu0 %v75
  %v210 = vpop.f32.mrf.mxu0
  %v211 = vadd.f32 %v44, %v210
  %v212 = vpop.f32.mrf.mxu0
  %213 = vmatprep.mubr.f32.mxu0 0.0
  %214 = vmatmul.mubr.f32.gmra.mxu0 %v78
  %v215 = vpop.f32.mrf.mxu0
  %v216 = vadd.f32 %v44, %v215
  %v217 = vpop.f32.mrf.mxu0
  %218 = vmatprep.mubr.f32.mxu0 0.0
  %219 = vmatmul.mubr.f32.gmra.mxu0 %v81
  %v220 = vpop.f32.mrf.mxu0
  %v221 = vadd.f32 %v44, %v220
  %v222 = vpop.f32.mrf.mxu0
  %223 = vmatprep.mubr.f32.mxu0 0.0
  %224 = vmatmul.mubr.f32.gmra.mxu0 %v84
  %v225 = vpop.f32.mrf.mxu0
  %v226 = vadd.f32 %v44, %v225
  %v227 = vpop.f32.mrf.mxu0
  %228 = vmatprep.mubr.f32.mxu0 0.0
  %229 = vmatmul.mubr.f32.gmra.mxu0 %v87
  %v230 = vpop.f32.mrf.mxu0
  %v231 = vadd.f32 %v44, %v230
  %v232 = vpop.f32.mrf.mxu0
  %233 = vmatprep.mubr.f32.mxu0 0.0
  %234 = vmatmul.mubr.f32.gmra.mxu0 %v90
  %v235 = vpop.f32.mrf.mxu0
  %v236 = vadd.f32 %v44, %v235
  %v237 = vpop.f32.mrf.mxu0
  %238 = vmatprep.mubr.f32.mxu0 0.0
  %239 = vmatmul.mubr.f32.gmra.mxu0 %v93
  %v240 = vpop.f32.mrf.mxu0
  %v241 = vadd.f32 %v44, %v240
  %v242 = vpop.f32.mrf.mxu0
  %243 = vdwg.mxu0
  %v244 = vmax.f32 %v166, 0.0
  %v245 = vmax.f32 %v171, 0.0
  %v246 = vmax.f32 %v176, 0.0
  %v247 = vmax.f32 %v181, 0.0
  %v248 = vmax.f32 %v186, 0.0
  %v249 = vmax.f32 %v191, 0.0
  %v250 = vmax.f32 %v196, 0.0
  %v251 = vmax.f32 %v201, 0.0
  %v252 = vmax.f32 %v206, 0.0
  %v253 = vmax.f32 %v211, 0.0
  %v254 = vmax.f32 %v216, 0.0
  %v255 = vmax.f32 %v221, 0.0
  %v256 = vmax.f32 %v226, 0.0
  %v257 = vmax.f32 %v231, 0.0
  %v258 = vmax.f32 %v236, 0.0
  %v259 = vmax.f32 %v241, 0.0
  %v260 = vld [vmem:[%s3] sm:$0xff]
  %v261 = vld [vmem:[%s3 + $0x8] sm:$0xff]
  %v262 = vld [vmem:[%s3 + $0x10] sm:$0xf]
  %s263 = sld [smem:[#allocation2]]
  %v264 = vstv %s263
  %vm265 = vcmask 162816
  %v267 = vsel %vm265, %v244, 0
  %v270 = vsel %vm265, %v245, 0
  %v273 = vsel %vm265, %v246, 0
  %v276 = vsel %vm265, %v247, 0
  %v279 = vsel %vm265, %v248, 0
  %v282 = vsel %vm265, %v249, 0
  %v285 = vsel %vm265, %v250, 0
  %v288 = vsel %vm265, %v251, 0
  %v291 = vsel %vm265, %v252, 0
  %v294 = vsel %vm265, %v253, 0
  %v297 = vsel %vm265, %v254, 0
  %v300 = vsel %vm265, %v255, 0
  %v303 = vsel %vm265, %v256, 0
  %v306 = vsel %vm265, %v257, 0
  %v309 = vsel %vm265, %v258, 0
  %v312 = vsel %vm265, %v259, 0
  %vm314 = vcmask 1043456
  %v316 = vsel %vm314, %v262, 0
  %318 = vmatprep.subr.mxu0 0.0
  %319 = vmatpush1.msra.mxu0 0.0
  %320 = vmatprep.subr.mxu0 0.0
  %321 = vmatpush1.msra.mxu0 0.0
  %322 = vmatprep.subr.mxu0 0.0
  %323 = vmatpush1.msra.mxu0 0.0
  %324 = vmatprep.subr.mxu0 0.0
  %325 = vmatpush1.msra.mxu0 0.0
  %326 = vmatprep.subr.mxu0 0.0
  %327 = vmatpush1.msra.mxu0 0.0
  %328 = vmatprep.subr.mxu0 0.0
  %329 = vmatpush1.msra.mxu0 0.0
  %330 = vmatprep.subr.mxu0 0.0
  %331 = vmatpush1.msra.mxu0 0.0
  %332 = vmatprep.subr.mxu0 0.0
  %333 = vmatpush1.msra.mxu0 0.0
  %334 = vmatprep.subr.mxu0 0.0
  %335 = vmatpush1.msra.mxu0 0.0
  %336 = vmatprep.subr.mxu0 0.0
  %337 = vmatpush1.msra.mxu0 0.0
  %338 = vmatprep.subr.mxu0 0.0
  %339 = vmatpush1.msra.mxu0 0.0
  %340 = vmatprep.subr.mxu0 0.0
  %341 = vmatpush1.msra.mxu0 0.0
  %342 = vmatprep.subr.mxu0 0.0
  %343 = vmatpush1.msra.mxu0 0.0
  %344 = vmatprep.subr.mxu0 0.0
  %345 = vmatpush1.msra.mxu0 %v316
  %346 = vmatprep.subr.mxu0 0.0
  %347 = vmatpush1.msra.mxu0 %v261
  %348 = vmatprep.subr.mxu0 0.0
  %349 = vmatpush1.msra.mxu0 %v260
  %350 = vmatprep.subr.mxu0 0.0
  %351 = vmatpush2.msra.mxu0 0.0
  %352 = vmatprep.subr.mxu0 0.0
  %353 = vmatpush2.msra.mxu0 0.0
  %354 = vmatprep.subr.mxu0 0.0
  %355 = vmatpush2.msra.mxu0 0.0
  %356 = vmatprep.subr.mxu0 0.0
  %357 = vmatpush2.msra.mxu0 0.0
  %358 = vmatprep.subr.mxu0 0.0
  %359 = vmatpush2.msra.mxu0 0.0
  %360 = vmatprep.subr.mxu0 0.0
  %361 = vmatpush2.msra.mxu0 0.0
  %362 = vmatprep.subr.mxu0 0.0
  %363 = vmatpush2.msra.mxu0 0.0
  %364 = vmatprep.subr.mxu0 0.0
  %365 = vmatpush2.msra.mxu0 0.0
  %366 = vmatprep.subr.mxu0 0.0
  %367 = vmatpush2.msra.mxu0 0.0
  %368 = vmatprep.subr.mxu0 0.0
  %369 = vmatpush2.msra.mxu0 0.0
  %370 = vmatprep.subr.mxu0 0.0
  %371 = vmatpush2.msra.mxu0 0.0
  %372 = vmatprep.subr.mxu0 0.0
  %373 = vmatpush2.msra.mxu0 0.0
  %374 = vmatprep.subr.mxu0 0.0
  %375 = vmatpush2.msra.mxu0 0.0
  %376 = vmatprep.subr.mxu0 0.0
  %377 = vmatpush2.msra.mxu0 0.0
  %378 = vmatprep.subr.mxu0 0.0
  %379 = vmatpush2.msra.mxu0 0.0
  %380 = vmatprep.subr.mxu0 0.0
  %381 = vmatpush2.msra.mxu0 0.0
  %382 = vmatprep.mubr.f32.mxu0 0.0
  %383 = vmatmul.mubr.f32.gmra.mxu0 %v267
  %v384 = vpop.f32.mrf.mxu0
  %v385 = vadd.f32 %v264, %v384
  %v386 = vpop.f32.mrf.mxu0
  %387 = vmatprep.mubr.f32.mxu0 0.0
  %388 = vmatmul.mubr.f32.gmra.mxu0 %v270
  %v389 = vpop.f32.mrf.mxu0
  %v390 = vadd.f32 %v264, %v389
  %v391 = vpop.f32.mrf.mxu0
  %392 = vmatprep.mubr.f32.mxu0 0.0
  %393 = vmatmul.mubr.f32.gmra.mxu0 %v273
  %v394 = vpop.f32.mrf.mxu0
  %v395 = vadd.f32 %v264, %v394
  %v396 = vpop.f32.mrf.mxu0
  %397 = vmatprep.mubr.f32.mxu0 0.0
  %398 = vmatmul.mubr.f32.gmra.mxu0 %v276
  %v399 = vpop.f32.mrf.mxu0
  %v400 = vadd.f32 %v264, %v399
  %v401 = vpop.f32.mrf.mxu0
  %402 = vmatprep.mubr.f32.mxu0 0.0
  %403 = vmatmul.mubr.f32.gmra.mxu0 %v279
  %v404 = vpop.f32.mrf.mxu0
  %v405 = vadd.f32 %v264, %v404
  %v406 = vpop.f32.mrf.mxu0
  %407 = vmatprep.mubr.f32.mxu0 0.0
  %408 = vmatmul.mubr.f32.gmra.mxu0 %v282
  %v409 = vpop.f32.mrf.mxu0
  %v410 = vadd.f32 %v264, %v409
  %v411 = vpop.f32.mrf.mxu0
  %412 = vmatprep.mubr.f32.mxu0 0.0
  %413 = vmatmul.mubr.f32.gmra.mxu0 %v285
  %v414 = vpop.f32.mrf.mxu0
  %v415 = vadd.f32 %v264, %v414
  %v416 = vpop.f32.mrf.mxu0
  %417 = vmatprep.mubr.f32.mxu0 0.0
  %418 = vmatmul.mubr.f32.gmra.mxu0 %v288
  %v419 = vpop.f32.mrf.mxu0
  %v420 = vadd.f32 %v264, %v419
  %v421 = vpop.f32.mrf.mxu0
  %422 = vmatprep.mubr.f32.mxu0 0.0
  %423 = vmatmul.mubr.f32.gmra.mxu0 %v291
  %v424 = vpop.f32.mrf.mxu0
  %v425 = vadd.f32 %v264, %v424
  %v426 = vpop.f32.mrf.mxu0
  %427 = vmatprep.mubr.f32.mxu0 0.0
  %428 = vmatmul.mubr.f32.gmra.mxu0 %v294
  %v429 = vpop.f32.mrf.mxu0
  %v430 = vadd.f32 %v264, %v429
  %v431 = vpop.f32.mrf.mxu0
  %432 = vmatprep.mubr.f32.mxu0 0.0
  %433 = vmatmul.mubr.f32.gmra.mxu0 %v297
  %v434 = vpop.f32.mrf.mxu0
  %v435 = vadd.f32 %v264, %v434
  %v436 = vpop.f32.mrf.mxu0
  %437 = vmatprep.mubr.f32.mxu0 0.0
  %438 = vmatmul.mubr.f32.gmra.mxu0 %v300
  %v439 = vpop.f32.mrf.mxu0
  %v440 = vadd.f32 %v264, %v439
  %v441 = vpop.f32.mrf.mxu0
  %442 = vmatprep.mubr.f32.mxu0 0.0
  %443 = vmatmul.mubr.f32.gmra.mxu0 %v303
  %v444 = vpop.f32.mrf.mxu0
  %v445 = vadd.f32 %v264, %v444
  %v446 = vpop.f32.mrf.mxu0
  %447 = vmatprep.mubr.f32.mxu0 0.0
  %448 = vmatmul.mubr.f32.gmra.mxu0 %v306
  %v449 = vpop.f32.mrf.mxu0
  %v450 = vadd.f32 %v264, %v449
  %v451 = vpop.f32.mrf.mxu0
  %452 = vmatprep.mubr.f32.mxu0 0.0
  %453 = vmatmul.mubr.f32.gmra.mxu0 %v309
  %v454 = vpop.f32.mrf.mxu0
  %v455 = vadd.f32 %v264, %v454
  %v456 = vpop.f32.mrf.mxu0
  %457 = vmatprep.mubr.f32.mxu0 0.0
  %458 = vmatmul.mubr.f32.gmra.mxu0 %v312
  %v459 = vpop.f32.mrf.mxu0
  %v460 = vadd.f32 %v264, %v459
  %v461 = vpop.f32.mrf.mxu0
  %462 = vdwg.mxu0
  %vm463 = vcmask 7168
  %464 = vst.msk [vmem:[%s5] sm:$0xff] %vm463, %v385
  %465 = vst.msk [vmem:[%s5 + $0x8] sm:$0xff] %vm463, %v390
  %466 = vst.msk [vmem:[%s5 + $0x10] sm:$0xff] %vm463, %v395
  %467 = vst.msk [vmem:[%s5 + $0x18] sm:$0xff] %vm463, %v400
  %468 = vst.msk [vmem:[%s5 + $0x20] sm:$0xff] %vm463, %v405
  %469 = vst.msk [vmem:[%s5 + $0x28] sm:$0xff] %vm463, %v410
  %470 = vst.msk [vmem:[%s5 + $0x30] sm:$0xff] %vm463, %v415
  %471 = vst.msk [vmem:[%s5 + $0x38] sm:$0xff] %vm463, %v420
  %472 = vst.msk [vmem:[%s5 + $0x40] sm:$0xff] %vm463, %v425
  %473 = vst.msk [vmem:[%s5 + $0x48] sm:$0xff] %vm463, %v430
  %474 = vst.msk [vmem:[%s5 + $0x50] sm:$0xff] %vm463, %v435
  %475 = vst.msk [vmem:[%s5 + $0x58] sm:$0xff] %vm463, %v440
  %476 = vst.msk [vmem:[%s5 + $0x60] sm:$0xff] %vm463, %v445
  %477 = vst.msk [vmem:[%s5 + $0x68] sm:$0xff] %vm463, %v450
  %478 = vst.msk [vmem:[%s5 + $0x70] sm:$0xff] %vm463, %v455
  %479 = vst.msk [vmem:[%s5 + $0x78] sm:$0xff] %vm463, %v460
  // Predicated region
  $region22: #{model_parallel_net.1} parent=0 // pred_check
    _
  $region23: #{model_parallel_net.1} parent=0 // pred_check_branch
    %481 = sbr.rel (0) target = $region25
  $region24: #{model_parallel_net.1} parent=0 // pred_region
    _
  $region25: #{model_parallel_net.1} parent=0 // pred_fallthru
    _
  // Predicated region
  $region26: #{model_parallel_net.1} parent=0 // pred_check
    _
  $region27: #{model_parallel_net.1} parent=0 // pred_check_branch
    %483 = sbr.rel (0) target = $region29
  $region28: #{model_parallel_net.1} parent=0 // pred_region
    _
  $region29: #{model_parallel_net.1} parent=0 // pred_fallthru
    _

</llo_original>
